<compile_context>
chip_gen: v7x
topology: tpu7x:2x2x1
jax: 0.10.0
libtpu: 0.0.40
codegen_flags: <defaults>
</compile_context>

<pallas_src>
import functools

import jax
import jax.numpy as jnp
from jax.experimental import pallas as pl
from jax.experimental.pallas import tpu as pltpu


def _round_up(x, m):
    return (x + m - 1) // m * m


def _vmem_capacity_bytes():
    """Per-generation VMEM capacity; conservative fallback (v7x per-TC) if unknown."""
    try:
        info = pltpu.get_tpu_info()
        cap = getattr(info, "vmem_capacity_bytes", None)
        if cap:
            return int(cap)
    except Exception:
        pass
    return 64 * 1024 * 1024


# ---------------------------------------------------------------------------
# Pallas kernel: streamed partial-Gram accumulation.
# ---------------------------------------------------------------------------
def _partial_gram_kernel(x_ref, g_out_ref, g_acc, *, l_true):
    # x_ref    : (N, tL)    streamed feature tile (bf16/native), VMEM
    # g_out_ref: (1, N, N)  per-split partial Gram output (f32)
    # g_acc    : (N, N)     f32 Gram accumulator, VMEM scratch (per-core)
    p = pl.program_id(0)          # L-range split ("parallel": one per TensorCore on v7x)
    k = pl.program_id(1)          # reduction step inside the split ("arbitrary")
    t_l = x_ref.shape[1]

    @pl.when(k == 0)
    def _init():
        g_acc[...] = jnp.zeros_like(g_acc)

    feats = x_ref[...]            # native stream dtype; MXU accumulates in f32
    col_start = (p * pl.num_programs(1) + k) * t_l   # logical global column offset
    full_tile = col_start + t_l <= l_true

    def _accum(f):
        # Canonical acc += dot form (v7x MRB in-place accumulate friendly).
        g_acc[...] += jax.lax.dot_general(
            f, f,
            dimension_numbers=(((1,), (1,)), ((), ())),   # F @ F.T
            preferred_element_type=jnp.float32,
        )

    @pl.when(full_tile)
    def _hot():                   # hot path: no masking work
        _accum(feats)

    @pl.when(jnp.logical_not(full_tile))
    def _tail():                  # boundary / fully-out-of-range tiles only
        cols = col_start + jax.lax.broadcasted_iota(jnp.int32, feats.shape, 1)
        _accum(jnp.where(cols < l_true, feats, 0).astype(feats.dtype))

    @pl.when(k == pl.num_programs(1) - 1)
    def _finalize():
        g_out_ref[...] = g_acc[...][None, :, :]


# ---------------------------------------------------------------------------
# Plain-XLA reference / tiny-problem bypass.
# ---------------------------------------------------------------------------
def gram_matrix_ref(x):
    a, b, c, d = x.shape
    f = x.reshape(a * b, c * d).astype(jnp.float32)
    G = f @ f.T
    return G / jnp.linalg.norm(G)      # Frobenius norm (NaN for all-zero input, like torch)


def _style_loss_xla(x, target_grams, weight):
    G = gram_matrix_ref(x)
    t = target_grams.astype(jnp.float32)
    mses = jnp.mean((G[None, :, :] - t) ** 2, axis=(1, 2))
    return jnp.float32(weight) * jnp.mean(mses)


def style_loss_ref(x, target_grams, weight):
    return _style_loss_xla(x, target_grams, weight)


# ---------------------------------------------------------------------------
# Wrapper.
# ---------------------------------------------------------------------------
def style_loss_forward(x, target_grams, weight, *, stream_dtype=jnp.bfloat16,
                       force_pallas=False, min_pallas_elems=1 << 18):
    """x: (a, b, c, d) NCHW.  target_grams: (T, a*b, a*b).  Returns (x, loss)."""
    a, b, c, d = x.shape
    n = a * b
    l = c * d
    assert target_grams.shape[1:] == (n, n), "target gram shape mismatch"

    # Tiny-problem bypass: fixed pallas_call cost dominates; fused XLA is faster.
    if not force_pallas and n * l < min_pallas_elems:
        return x, _style_loss_xla(x, target_grams, weight)

    feats = x.reshape(n, l)
    if stream_dtype is not None:
        # Halves HBM bytes of the dominant stream; fuses into the producer in a real net.
        feats = feats.astype(stream_dtype)

    elt = jnp.dtype(feats.dtype).itemsize
    n_sub = _round_up(n, 32 // elt)          # sublane-packed row count (footprint estimate only)
    n8, n128 = _round_up(n, 8), _round_up(n, 128)

    # Generation-aware tile sizing: derive tL from the actual VMEM budget.
    vmem_cap = _vmem_capacity_bytes()
    budget = (vmem_cap * 3) // 4             # headroom for compiler scratch / output buffers
    fixed_bytes = 3 * n8 * n128 * 4          # Gram accumulator + double-buffered output block
    per_col = 2 * n_sub * elt                # double-buffered streamed feature tile, per lane column
    t_l_budget = max(512, (max(budget - fixed_bytes, 0) // per_col) // 512 * 512)

    if l <= 512:
        t_l = _round_up(l, 128)
    else:
        # Prefer >= 2 tiles so the leading "parallel" axis can use both v7x TensorCores
        # (harmless single extra step elsewhere); otherwise take the biggest tile that fits.
        t_l = max(512, min(t_l_budget, _round_up(-(-l // 2), 512)))

    grid_k = -(-l // t_l)                    # number of valid L tiles
    splits = 2 if grid_k >= 2 else 1         # leading "parallel" axis (2 TCs on v7x)
    half_k = -(-grid_k // splits)

    vmem_est = fixed_bytes + 2 * n_sub * t_l * elt
    vmem_limit = int(min(vmem_cap - (8 << 20), max(vmem_est + (8 << 20), 32 << 20)))

    # Clamp the logical tile index so a (rare) fully-out-of-range tile re-reads a valid
    # block; its contribution is zeroed by the in-kernel mask.
    feat_index_map = lambda p, k: (0, jnp.minimum(p * half_k + k, grid_k - 1))

    partial_grams = pl.pallas_call(
        functools.partial(_partial_gram_kernel, l_true=l),
        out_shape=jax.ShapeDtypeStruct((splits, n, n), jnp.float32),
        grid=(splits, half_k),
        in_specs=[pl.BlockSpec((n, t_l), feat_index_map)],
        out_specs=pl.BlockSpec((1, n, n), lambda p, k: (p, 0, 0)),
        scratch_shapes=[pltpu.VMEM((n, n), jnp.float32)],
        compiler_params=pltpu.CompilerParams(
            dimension_semantics=("parallel", "arbitrary"),
            vmem_limit_bytes=vmem_limit,
        ),
    )(feats)

    # O(T*N^2) epilogue in plain XLA: sum partials, Frobenius-normalize, direct MSE
    # (no expanded identity -> no catastrophic cancellation near convergence).
    G = jnp.sum(partial_grams, axis=0)
    G = G / jnp.linalg.norm(G)
    t = target_grams.astype(jnp.float32)
    mses = jnp.mean((G[None, :, :] - t) ** 2, axis=(1, 2))
    loss = jnp.float32(weight) * jnp.mean(mses)

    # StyleLoss.forward returns its input unchanged (transparent loss module).
    return x, loss


if __name__ == "__main__":
    key = jax.random.PRNGKey(0)
    k_in, k_t0, k_t1 = jax.random.split(key, 3)

    # a=1 batch (StyleLoss grams come from unsqueeze(0)'d features), C=16, 24x24 spatial.
    # -> N = 16 rows, L = 576 columns: exercises both the 2-way L split and tail masking.
    C, H, W = 16, 24, 24
    x = jax.random.normal(k_in, (1, C, H, W), dtype=jnp.float32)

    target_features = [
        jax.random.normal(k_t0, (C, H, W), dtype=jnp.float32),
        jax.random.normal(k_t1, (C, H, W), dtype=jnp.float32),
    ]
    target_grams = jnp.stack([gram_matrix_ref(tf[None]) for tf in target_features])  # (2, C, C)
    weight = 1000.0

    # Pallas path (force past the tiny-problem XLA bypass so the kernel actually runs).
    out, loss = style_loss_forward(x, target_grams, weight, force_pallas=True)
    out = jax.block_until_ready(out)
    loss = jax.block_until_ready(loss)

    assert jnp.allclose(out, x), "forward must return its input unchanged"

    # Matched-precision reference (bf16 feature stream, f32 accumulate): tight check.
    x_matched = x.astype(jnp.bfloat16).astype(jnp.float32)
    loss_matched = style_loss_ref(x_matched, target_grams, weight)
    assert jnp.allclose(loss, loss_matched, rtol=2e-3, atol=1e-4), (loss, loss_matched)

    # Full-f32 reference: looser check (bf16 stream quantization of the input features).
    loss_f32 = style_loss_ref(x, target_grams, weight)
    assert jnp.allclose(loss, loss_f32, rtol=5e-2, atol=1e-3), (loss, loss_f32)

    # Tiny-problem XLA bypass path (default thresholds route this size to XLA).
    _, loss_bypass = style_loss_forward(x, target_grams, weight)
    loss_bypass = jax.block_until_ready(loss_bypass)
    assert jnp.allclose(loss_bypass, loss_f32, rtol=1e-5, atol=1e-6), (loss_bypass, loss_f32)

    print("KERNEL_OK")
</pallas_src>

<mosaic_0001>
module attributes {stable_mosaic.version = 11 : i64} {
  func.func @_partial_gram_kernel(%arg0: i32, %arg1: i32, %arg2: memref<16x512xbf16, #tpu.memory_space<vmem>>, %arg3: memref<1x16x16xf32, #tpu.memory_space<vmem>>, %arg4: memref<16x16xf32, #tpu.memory_space<vmem>>) attributes {dimension_semantics = [#tpu.dimension_semantics<parallel>, #tpu.dimension_semantics<arbitrary>], iteration_bounds = array<i64: 2, 1>, scalar_prefetch = 0 : i64, scratch_operands = 1 : i64, tpu.core_type = #tpu.core_type<tc>, window_params = [{transform_indices = @transform_0, window_bounds = array<i64: 16, 512>}, {transform_indices = @transform_1, window_bounds = array<i64: 1, 16, 16>}]} {
    %c0_i32 = arith.constant 0 : i32
    %0 = arith.cmpi eq, %arg1, %c0_i32 : i32
    %1 = arith.extui %0 : i1 to i32
    %c0_i32_0 = arith.constant 0 : i32
    %2 = arith.cmpi ne, %1, %c0_i32_0 : i32
    scf.if %2 {
      %cst = arith.constant 0.000000e+00 : f32
      %17 = vector.broadcast %cst : f32 to vector<16x16xf32>
      %c0_7 = arith.constant 0 : index
      %c0_8 = arith.constant 0 : index
      %18 = vector.load %arg4[%c0_7, %c0_8] : memref<16x16xf32, #tpu.memory_space<vmem>>, vector<16x16xf32>
      tpu.vector_store %arg4[%c0_7, %c0_8], %17 {strides = array<i32>} : memref<16x16xf32, #tpu.memory_space<vmem>>, vector<16x16xf32>,
    } else {
    }
    %c0 = arith.constant 0 : index
    %c0_1 = arith.constant 0 : index
    %3 = vector.load %arg2[%c0, %c0_1] : memref<16x512xbf16, #tpu.memory_space<vmem>>, vector<16x512xbf16>
    %c1_i32 = arith.constant 1 : i32
    %4 = arith.muli %arg0, %c1_i32 : i32
    %5 = arith.addi %4, %arg1 : i32
    %c512_i32 = arith.constant 512 : i32
    %6 = arith.muli %5, %c512_i32 : i32
    %c512_i32_2 = arith.constant 512 : i32
    %7 = arith.addi %6, %c512_i32_2 : i32
    %c576_i32 = arith.constant 576 : i32
    %8 = arith.cmpi sle, %7, %c576_i32 : i32
    %9 = arith.extui %8 : i1 to i32
    %c0_i32_3 = arith.constant 0 : i32
    %10 = arith.cmpi ne, %9, %c0_i32_3 : i32
    scf.if %10 {
      %c0_7 = arith.constant 0 : index
      %c0_8 = arith.constant 0 : index
      %17 = vector.load %arg4[%c0_7, %c0_8] : memref<16x16xf32, #tpu.memory_space<vmem>>, vector<16x16xf32>
      %cst = arith.constant dense<0.000000e+00> : vector<16x16xf32>
      %18 = tpu.matmul %3, %3, %cst {dimension_numbers = #tpu.dot_dimension_numbers<[1], [1], [0], [0], [0, 0, 1, 0], [], []>} : vector<16x512xbf16>, vector<16x512xbf16>, vector<16x16xf32> -> vector<16x16xf32>
      %19 = arith.addf %17, %18 : vector<16x16xf32>
      %c0_9 = arith.constant 0 : index
      %c0_10 = arith.constant 0 : index
      %20 = vector.load %arg4[%c0_9, %c0_10] : memref<16x16xf32, #tpu.memory_space<vmem>>, vector<16x16xf32>
      tpu.vector_store %arg4[%c0_9, %c0_10], %19 {strides = array<i32>} : memref<16x16xf32, #tpu.memory_space<vmem>>, vector<16x16xf32>,
    } else {
    }
    %true = arith.constant true
    %11 = arith.xori %8, %true : i1
    %12 = arith.extui %11 : i1 to i32
    %c0_i32_4 = arith.constant 0 : i32
    %13 = arith.cmpi ne, %12, %c0_i32_4 : i32
    scf.if %13 {
      %17 = tpu.iota {dimensions = array<i32: 1>} : vector<16x512xi32>
      %18 = vector.broadcast %6 : i32 to vector<16x512xi32>
      %19 = arith.addi %18, %17 : vector<16x512xi32>
      %c576_i32_7 = arith.constant 576 : i32
      %20 = vector.broadcast %c576_i32_7 : i32 to vector<16x512xi32>
      %21 = arith.cmpi slt, %19, %20 : vector<16x512xi32>
      %c0_i32_8 = arith.constant 0 : i32
      %22 = arith.sitofp %c0_i32_8 : i32 to bf16
      %23 = vector.broadcast %22 : bf16 to vector<16x512xbf16>
      %24 = arith.select %21, %3, %23 : vector<16x512xi1>, vector<16x512xbf16>
      %c0_9 = arith.constant 0 : index
      %c0_10 = arith.constant 0 : index
      %25 = vector.load %arg4[%c0_9, %c0_10] : memref<16x16xf32, #tpu.memory_space<vmem>>, vector<16x16xf32>
      %cst = arith.constant dense<0.000000e+00> : vector<16x16xf32>
      %26 = tpu.matmul %24, %24, %cst {dimension_numbers = #tpu.dot_dimension_numbers<[1], [1], [0], [0], [0, 0, 1, 0], [], []>} : vector<16x512xbf16>, vector<16x512xbf16>, vector<16x16xf32> -> vector<16x16xf32>
      %27 = arith.addf %25, %26 : vector<16x16xf32>
      %c0_11 = arith.constant 0 : index
      %c0_12 = arith.constant 0 : index
      %28 = vector.load %arg4[%c0_11, %c0_12] : memref<16x16xf32, #tpu.memory_space<vmem>>, vector<16x16xf32>
      tpu.vector_store %arg4[%c0_11, %c0_12], %27 {strides = array<i32>} : memref<16x16xf32, #tpu.memory_space<vmem>>, vector<16x16xf32>,
    } else {
    }
    %c0_i32_5 = arith.constant 0 : i32
    %14 = arith.cmpi eq, %arg1, %c0_i32_5 : i32
    %15 = arith.extui %14 : i1 to i32
    %c0_i32_6 = arith.constant 0 : i32
    %16 = arith.cmpi ne, %15, %c0_i32_6 : i32
    scf.if %16 {
      %c0_7 = arith.constant 0 : index
      %c0_8 = arith.constant 0 : index
      %17 = vector.load %arg4[%c0_7, %c0_8] : memref<16x16xf32, #tpu.memory_space<vmem>>, vector<16x16xf32>
      %18 = vector.shape_cast %17 : vector<16x16xf32> to vector<1x16x16xf32>
      %c0_9 = arith.constant 0 : index
      %c0_10 = arith.constant 0 : index
      %c0_11 = arith.constant 0 : index
      %19 = vector.load %arg3[%c0_9, %c0_10, %c0_11] : memref<1x16x16xf32, #tpu.memory_space<vmem>>, vector<1x16x16xf32>
      tpu.vector_store %arg3[%c0_9, %c0_10, %c0_11], %18 {strides = array<i32>} : memref<1x16x16xf32, #tpu.memory_space<vmem>>, vector<1x16x16xf32>,
    } else {
    }
    return
  }
  func.func @transform_0(%arg0: i32, %arg1: i32) -> (i32, i32) {
    %c1_i32 = arith.constant 1 : i32
    %0 = arith.muli %arg0, %c1_i32 : i32
    %1 = arith.addi %0, %arg1 : i32
    %c1_i32_0 = arith.constant 1 : i32
    %2 = arith.minsi %1, %c1_i32_0 : i32
    %c0_i32 = arith.constant 0 : i32
    %c0_i32_1 = arith.constant 0 : i32
    return %c0_i32, %2 : i32, i32
  }
  func.func @transform_1(%arg0: i32, %arg1: i32) -> (i32, i32, i32) {
    %c0_i32 = arith.constant 0 : i32
    %c0_i32_0 = arith.constant 0 : i32
    %c0_i32_1 = arith.constant 0 : i32
    return %arg0, %c0_i32, %c0_i32_0 : i32, i32, i32
  }
}

</mosaic_0001>

<llo_original>
// kernel: tpu_custom_call.1
$region0: #{tpu_custom_call.1}
  #allocation0 [shape = 'u32[]', space=smem, size = 0x4, offset = 0x4, fixed_abs, tag = 'smem constant byte address 0x4 - core index']
  #allocation1 [shape = 'u32[144,128]{1,0:T(1,128)}', space=vmem, size = 0x12000, scoped, tag = 'internal scratch']
  #allocation2 [shape = 'f32[16,16]{1,0:T(8,128)}', space=vmem, size = 0x2000, scoped, tag = 'scratch operand']
  %s0 = inlined_call_operand.hbm [shape: bf16[16,576], index: 0, kind: input, shape index: {}]
  %s1 = inlined_call_operand.hbm [shape: f32[2,16,16], index: 1, kind: output, shape index: {}]
  %s2 = sld [smem:[#allocation0]]
  $region57: #{tpu_custom_call.1} parent=0
    _
  %s4 = ssub.s32 1, %s2
  %s5 = scalar_select 0, %s4, %s2
  $region1: #{tpu_custom_call.1} parent=0
    #allocation3 [shape = 'u8[32768]{0}', space=vmem, size = 0x8000, scoped, tag = 'input window, operand 0']
    #allocation4 [shape = 's32[2]{0}', space=sflag, size = 0x8, scoped, tag = 'scoped memory for tpu_custom_call.1']
    #allocation5 [shape = 's32[2]{0}', space=sflag, size = 0x8, scoped, tag = 'scoped memory for tpu_custom_call.1']
    #allocation6 [shape = 'u8[16384]{0}', space=vmem, size = 0x4000, scoped, tag = 'output window, operand 0']
    %6 = vsyncpa [#allocation4], 0
    %s7 = scalar_lea.sflag [#allocation4], 1
    %8 = vsyncpa %s7, 0
    %9 = vsyncpa [#allocation5], 0
    %s10 = scalar_lea.sflag [#allocation5], 1
    %11 = vsyncpa %s10, 0
    loop: start=0, step=1, limit=4
    $region2: #{tpu_custom_call.1} parent=1 // loop_pre_header
      _
    $region3: #{tpu_custom_call.1} parent=1 // loop_header
      %s13 = sphi 0, %s17
      %p14 = scmp.ge.s32.totalorder %s13, 4
      %s20 = sphi 0, %s32
      %s21 = sphi 0, %s28
      %s22 = sphi 0, %s20
      %s23 = sphi 0, %s21
      %s24 = sphi 0, %s22
      %s25 = sphi 0, %s23
      %s41 = sphi 0, %s43
      %s44 = sphi 0, %s41
      %s45 = sphi 0, %s44
      %s61 = sphi 0, %s45
      %s67 = sphi 0, %s69
      %s70 = sphi 0, %s67
      %s71 = sphi 0, %s70
      %s87 = sphi 0, %s71
    $region4: #{tpu_custom_call.1} parent=1 // loop_header_branch
      %16 = sbr.rel (%p14) target = $region8
    $region5: #{tpu_custom_call.1} parent=1 // loop_body
      %s18 = ssub.s32 %s13, 1
      %s19 = ssub.s32 %s13, 2
      %s26 = sadd.s32 1, %s21
      %p27 = scmp.ge.s32.totalorder %s26, 1
      %s28 = scalar_select %p27, 0, %s26
      %s29 = sadd.s32 1, %s20
      %s30 = scalar_select %p27, %s29, %s20
      %p31 = scmp.ge.s32.totalorder %s30, 2
      %s32 = scalar_select %p31, 0, %s30
      %s33 = sadd.s32 %s20, %s21
      %p34 = scmp.lt.s32.totalorder %s33, 1
      %s35 = scalar_select %p34, %s33, 1
      %s36 = sadd.s32 %s32, %s28
      %p37 = scmp.lt.s32.totalorder %s36, 1
      %s38 = scalar_select %p37, %s36, 1
      %s39 = ssub.s32 %s35, %s38
      %p40 = scmp.eq.s32.totalorder %s39, 0
      %s42 = sadd.s32 %s41, 1
      %s43 = scalar_select %p40, %s41, %s42
      %p46 = pneg %p40
      %p47 = scmp.eq.s32.totalorder %s13, 1
      %p48 = por %p46, %p47
      %p49 = scmp.ne.s32.totalorder %s41, %s44
      %p50 = scmp.eq.s32.totalorder %s13, 0
      %p51 = por %p49, %p50
      %p52 = scmp.ne.s32.totalorder %s41, %s44
      %p53 = scmp.eq.s32.totalorder %s18, 1
      %p54 = por %p52, %p53
      %p55 = scmp.ne.s32.totalorder %s44, %s45
      %p56 = scmp.eq.s32.totalorder %s18, 0
      %p57 = por %p55, %p56
      %p58 = scmp.ne.s32.totalorder %s44, %s45
      %p59 = scmp.eq.s32.totalorder %s19, 1
      %p60 = por %p58, %p59
      %p62 = scmp.ne.s32.totalorder %s45, %s61
      %p63 = scmp.eq.s32.totalorder %s19, 0
      %p64 = por %p62, %p63
      %s65 = ssub.s32 %s20, %s32
      %p66 = scmp.eq.s32.totalorder %s65, 0
      %s68 = sadd.s32 %s67, 1
      %s69 = scalar_select %p66, %s67, %s68
      %p72 = pneg %p66
      %p73 = scmp.eq.s32.totalorder %s13, 1
      %p74 = por %p72, %p73
      %p75 = scmp.ne.s32.totalorder %s67, %s70
      %p76 = scmp.eq.s32.totalorder %s13, 0
      %p77 = por %p75, %p76
      %p78 = scmp.ne.s32.totalorder %s67, %s70
      %p79 = scmp.eq.s32.totalorder %s18, 1
      %p80 = por %p78, %p79
      %p81 = scmp.ne.s32.totalorder %s70, %s71
      %p82 = scmp.eq.s32.totalorder %s18, 0
      %p83 = por %p81, %p82
      %p84 = scmp.ne.s32.totalorder %s70, %s71
      %p85 = scmp.eq.s32.totalorder %s19, 1
      %p86 = por %p84, %p85
      %p88 = scmp.ne.s32.totalorder %s71, %s87
      %p89 = scmp.eq.s32.totalorder %s19, 0
      %p90 = por %p88, %p89
      %p91 = scmp.le.s32.totalorder 1, %s13
      %p92 = scmp.lt.s32.totalorder %s13, 3
      %p93 = pnand %p91, %p92
      %p94 = pneg %p93
      // Predicated region
      $region9: #{tpu_custom_call.1} parent=5 // pred_check
        _
      $region10: #{tpu_custom_call.1} parent=5 // pred_check_branch
        %96 = sbr.rel (%p93) target = $region12
      $region11: #{tpu_custom_call.1} parent=5 // pred_region
        %s97 = ssub.s32 %s13, 1
      $region12: #{tpu_custom_call.1} parent=5 // pred_fallthru
        _
      %p98 = scmp.lt.s32.totalorder %s13, 2
      // Predicated region
      $region13: #{tpu_custom_call.1} parent=5 // pred_check
        %p99 = pneg %p98
      $region14: #{tpu_custom_call.1} parent=5 // pred_check_branch
        %101 = sbr.rel (%p99) target = $region16
      $region15: #{tpu_custom_call.1} parent=5 // pred_region
        // Predicated region
        $region17: #{tpu_custom_call.1} parent=15 // pred_check
          %p102 = pneg %p51
        $region18: #{tpu_custom_call.1} parent=15 // pred_check_branch
          %104 = sbr.rel (%p102) target = $region20
        $region19: #{tpu_custom_call.1} parent=15 // pred_region
          %s105 = sand.u32 %s41, 1
          %s106 = scalar_lea.sflag [#allocation4], %s105
          %s107 = sand.u32 %s41, 1
          %s108 = smul.addr %s107, 32
          %s109 = scalar_lea.vmem [#allocation3], %s108
          %s110 = sadd.s32 %s20, %s21
          %p111 = scmp.lt.s32.totalorder %s110, 1
          %s112 = scalar_select %p111, %s110, 1
          %s113 = smul.u32 4, %s112
          %s114 = ssub.s32 5, %s113
          %p115 = scmp.lt.s32.totalorder %s114, 4
          %s116 = scalar_select %p115, %s114, 4
          %s117 = smul.u32 128, %s116
          %s119 = ssub.s32 512, %s117
          %120 = vsyncadd %s106, %s119
          %p121 = scmp.ne.s32.totalorder 0, %s117
          %s122 = smul.addr %s113, 64
          %s123 = scalar_lea.hbm %s0, %s122
          %s124 = smul.u32 %s116, 4
          %s125 = smul.u32 %s124, 2
          %s126 = sshll.u32 %s109, 4
          %s127 = int_to_ptr.vmem [resolvable:$true] %s126
          %s128 = sshll.u32 %s125, 4
          %132 = dma.hbm_to_vmem [thread:$0]  (%p121), %s123, %s128, %s127, %s106, 320, 256, %s124
        $region20: #{tpu_custom_call.1} parent=15 // pred_fallthru
          _
      $region16: #{tpu_custom_call.1} parent=5 // pred_fallthru
        _
      %p133 = scmp.le.s32.totalorder 1, %s13
      %p134 = scmp.lt.s32.totalorder %s13, 3
      %p135 = pnand %p133, %p134
      %p136 = pneg %p135
      // Predicated region
      $region21: #{tpu_custom_call.1} parent=5 // pred_check
        _
      $region22: #{tpu_custom_call.1} parent=5 // pred_check_branch
        %138 = sbr.rel (%p135) target = $region24
      $region23: #{tpu_custom_call.1} parent=5 // pred_region
        %s139 = ssub.s32 %s13, 1
        %s140 = sand.u32 %s44, 1
        %s141 = scalar_lea.sflag [#allocation4], %s140
        %s142 = sand.u32 %s44, 1
        %s143 = smul.addr %s142, 32
        %s144 = scalar_lea.vmem [#allocation3], %s143
        // Predicated region
        $region25: #{tpu_custom_call.1} parent=23 // pred_check
          %p145 = pneg %p57
        $region26: #{tpu_custom_call.1} parent=23 // pred_check_branch
          %147 = sbr.rel (%p145) target = $region28
        $region27: #{tpu_custom_call.1} parent=23 // pred_region
          %148 = dma.done %s141, 512
        $region28: #{tpu_custom_call.1} parent=23 // pred_fallthru
          _
        %s149 = sand.u32 %s44, 1
        %s150 = scalar_lea.sflag [#allocation4], %s149
        %s151 = sand.u32 %s44, 1
        %s152 = smul.addr %s151, 32
        %s153 = scalar_lea.vmem [#allocation3], %s152
        %p154 = pneg %p57
        %p155 = pneg %p54
        %p156 = pneg %p83
        %p157 = pneg %p80
        %s158 = sand.u32 %s70, 1
        %s159 = scalar_lea.sflag [#allocation5], %s158
        %s160 = sand.u32 %s70, 1
        %s161 = smul.addr %s160, 16
        %s162 = scalar_lea.vmem [#allocation6], %s161
        %s163 = sadd.s32 %s22, %s23
        %p164 = scmp.lt.s32.totalorder %s163, 1
        %s165 = scalar_select %p164, %s163, 1
        %s166 = smul.u32 4, %s165
        %s167 = ssub.s32 5, %s166
        %p168 = scmp.lt.s32.totalorder %s167, 4
        %s169 = scalar_select %p168, %s167, 4
        %s170 = smul.u32 128, %s169
        %p172 = scmp.eq.s32.totalorder %s23, 0
        // Predicated region
        $region29: #{tpu_custom_call.1} parent=23 // pred_check
          %p173 = pneg %p172
        $region30: #{tpu_custom_call.1} parent=23 // pred_check_branch
          %175 = sbr.rel (%p173) target = $region32
        $region31: #{tpu_custom_call.1} parent=23 // pred_region
          %vm176 = vcmask 130048
          %177 = vst.msk [vmem:[#allocation2] sm:$0xff] %vm176, 0.0
          %178 = vst.msk [vmem:[#allocation2 + $0x8] sm:$0xff] %vm176, 0.0
        $region32: #{tpu_custom_call.1} parent=23 // pred_fallthru
          _
        %v179 = vld [vmem:[%s144] sm:$0xff]
        %v180 = vld [vmem:[%s144 + $0x8] sm:$0xff]
        %v181 = vld [vmem:[%s144 + $0x10] sm:$0xff]
        %v182 = vld [vmem:[%s144 + $0x18] sm:$0xff]
        %s183 = sadd.s32 %s22, %s23
        %s184 = smul.u32 %s183, 512
        %s185 = sadd.s32 %s184, 512
        %p186 = scmp.le.s32.totalorder %s185, 576
        // Predicated region
        $region33: #{tpu_custom_call.1} parent=23 // pred_check
          %p187 = pneg %p186
        $region34: #{tpu_custom_call.1} parent=23 // pred_check_branch
          %189 = sbr.rel (%p187) target = $region36
        $region35: #{tpu_custom_call.1} parent=23 // pred_region
          %v190 = vld [vmem:[#allocation2] sm:$0xff]
          %v191 = vld [vmem:[#allocation2 + $0x8] sm:$0xff]
          %v196 = vunpack.c.l.b16 %v179
          %v197 = vunpack.c.h.b16 %v179
          %v198 = vunpack.c.l.b16 %v180
          %v199 = vunpack.c.h.b16 %v180
          %v200 = vunpack.c.l.b16 %v181
          %v201 = vunpack.c.h.b16 %v181
          %v202 = vunpack.c.l.b16 %v182
          %v203 = vunpack.c.h.b16 %v182
          %v204 = vpack.c.b16 %v200, %v196
          %v205 = vpack.c.b16 %v201, %v197
          %v206 = vpack.c.b16 %v202, %v198
          %v207 = vpack.c.b16 %v203, %v199
          %212 = vmatprep.subr.bf16.mxu0 %v205
          %213 = vmatpush1.bf16.xpose.msra.mxu0 %v204
          %214 = vmatprep.subr.bf16.mxu0 0
          %215 = vmatpush1.bf16.xpose.msra.mxu0 0
          %216 = vmatprep.subr.bf16.mxu0 0
          %217 = vmatpush1.bf16.xpose.msra.mxu0 0
          %218 = vmatprep.subr.bf16.mxu0 0
          %219 = vmatpush1.bf16.xpose.msra.mxu0 0
          %220 = vmatprep.subr.bf16.mxu0 0
          %221 = vmatpush1.bf16.xpose.msra.mxu0 0
          %222 = vmatprep.subr.bf16.mxu0 0
          %223 = vmatpush1.bf16.xpose.msra.mxu0 0
          %224 = vmatprep.subr.bf16.mxu0 0
          %225 = vmatpush1.bf16.xpose.msra.mxu0 0
          %226 = vmatprep.subr.bf16.mxu0 0
          %227 = vmatpush1.bf16.xpose.msra.mxu0 0
          %228 = vmatprep.subr.bf16.mxu0 0
          %229 = vmatpush1.bf16.xpose.msra.mxu0 0
          %230 = vmatprep.subr.bf16.mxu0 0
          %231 = vmatpush1.bf16.xpose.msra.mxu0 0
          %232 = vmatprep.subr.bf16.mxu0 0
          %233 = vmatpush1.bf16.xpose.msra.mxu0 0
          %234 = vmatprep.subr.bf16.mxu0 0
          %235 = vmatpush1.bf16.xpose.msra.mxu0 0
          %236 = vmatprep.subr.bf16.mxu0 0
          %237 = vmatpush1.bf16.xpose.msra.mxu0 0
          %238 = vmatprep.subr.bf16.mxu0 0
          %239 = vmatpush1.bf16.xpose.msra.mxu0 0
          %240 = vmatprep.subr.bf16.mxu0 0
          %241 = vmatpush1.bf16.xpose.msra.mxu0 0
          %242 = vmatprep.subr.bf16.mxu0 0
          %243 = vmatpush1.bf16.xpose.msra.mxu0 0
          %244 = vmatprep.mubr.bf16.mxu0 %v205
          %245 = vmatmul.mubr.bf16.gmra.mrb[0].mxu0 %v204
          %v246 = vpop.f32.mrb[0].mxu0
          %v247 = vadd.f32 0.0, %v246
          %v248 = vpop.f32.mrb[0].mxu0
          %v249 = vpop.f32.mrb[0].mxu0
          %v250 = vadd.f32 0.0, %v249
          %v251 = vpop.f32.mrb[0].mxu0
          %252 = vdwg.mxu0
          %253 = vmatprep.subr.bf16.mxu0 %v207
          %254 = vmatpush1.bf16.xpose.msra.mxu0 %v206
          %255 = vmatprep.subr.bf16.mxu0 0
          %256 = vmatpush1.bf16.xpose.msra.mxu0 0
          %257 = vmatprep.subr.bf16.mxu0 0
          %258 = vmatpush1.bf16.xpose.msra.mxu0 0
          %259 = vmatprep.subr.bf16.mxu0 0
          %260 = vmatpush1.bf16.xpose.msra.mxu0 0
          %261 = vmatprep.subr.bf16.mxu0 0
          %262 = vmatpush1.bf16.xpose.msra.mxu0 0
          %263 = vmatprep.subr.bf16.mxu0 0
          %264 = vmatpush1.bf16.xpose.msra.mxu0 0
          %265 = vmatprep.subr.bf16.mxu0 0
          %266 = vmatpush1.bf16.xpose.msra.mxu0 0
          %267 = vmatprep.subr.bf16.mxu0 0
          %268 = vmatpush1.bf16.xpose.msra.mxu0 0
          %269 = vmatprep.subr.bf16.mxu0 0
          %270 = vmatpush1.bf16.xpose.msra.mxu0 0
          %271 = vmatprep.subr.bf16.mxu0 0
          %272 = vmatpush1.bf16.xpose.msra.mxu0 0
          %273 = vmatprep.subr.bf16.mxu0 0
          %274 = vmatpush1.bf16.xpose.msra.mxu0 0
          %275 = vmatprep.subr.bf16.mxu0 0
          %276 = vmatpush1.bf16.xpose.msra.mxu0 0
          %277 = vmatprep.subr.bf16.mxu0 0
          %278 = vmatpush1.bf16.xpose.msra.mxu0 0
          %279 = vmatprep.subr.bf16.mxu0 0
          %280 = vmatpush1.bf16.xpose.msra.mxu0 0
          %281 = vmatprep.subr.bf16.mxu0 0
          %282 = vmatpush1.bf16.xpose.msra.mxu0 0
          %283 = vmatprep.subr.bf16.mxu0 0
          %284 = vmatpush1.bf16.xpose.msra.mxu0 0
          %285 = vmatprep.mubr.bf16.mxu0 %v207
          %286 = vmatmul.mubr.bf16.gmra.mrb[0].mxu0 %v206
          %v287 = vpop.f32.mrb[0].mxu0
          %v288 = vadd.f32 %v247, %v287
          %v289 = vpop.f32.mrb[0].mxu0
          %v290 = vpop.f32.mrb[0].mxu0
          %v291 = vadd.f32 %v250, %v290
          %v292 = vpop.f32.mrb[0].mxu0
          %293 = vdwg.mxu0
          %v294 = vadd.f32 %v190, %v288
          %v295 = vadd.f32 %v191, %v291
          %vm296 = vcmask 130048
          %297 = vst.msk [vmem:[#allocation2] sm:$0xff] %vm296, %v294
          %298 = vst.msk [vmem:[#allocation2 + $0x8] sm:$0xff] %vm296, %v295
        $region36: #{tpu_custom_call.1} parent=23 // pred_fallthru
          _
        %p299 = scmp.gt.s32.totalorder %s185, 576
        // Predicated region
        $region37: #{tpu_custom_call.1} parent=23 // pred_check
          %p300 = pneg %p299
        $region38: #{tpu_custom_call.1} parent=23 // pred_check_branch
          %302 = sbr.rel (%p300) target = $region40
        $region39: #{tpu_custom_call.1} parent=23 // pred_region
          %v303 = vlaneseq
          %v304 = vand.u32 %v303, 127
          %v305 = vadd.s32 %v304, 128
          %v306 = vadd.s32 %v304, 256
          %v307 = vadd.s32 %v304, 384
          %v308 = vstv %s184
          %v309 = vadd.s32 %v308, %v304
          %v310 = vadd.s32 %v308, %v305
          %v311 = vadd.s32 %v308, %v306
          %v312 = vadd.s32 %v308, %v307
          %vm313 = vcmp.lt.s32.totalorder %v309, 576
          %vm314 = vcmp.lt.s32.totalorder %v310, 576
          %vm315 = vcmp.lt.s32.totalorder %v311, 576
          %vm316 = vcmp.lt.s32.totalorder %v312, 576
          %vm317 = vmpackc.low %vm314, %vm313
          %vm318 = vmpackc.low %vm316, %vm315
          %v319 = vsel %vm317, %v179, 0
          %v320 = vsel %vm318, %v180, 0
          %v321 = vsel %vm317, %v181, 0
          %v322 = vsel %vm318, %v182, 0
          %v323 = vld [vmem:[#allocation2] sm:$0xff]
          %v324 = vld [vmem:[#allocation2 + $0x8] sm:$0xff]
          %v329 = vunpack.c.l.b16 %v319
          %v330 = vunpack.c.h.b16 %v319
          %v331 = vunpack.c.l.b16 %v320
          %v332 = vunpack.c.h.b16 %v320
          %v333 = vunpack.c.l.b16 %v321
          %v334 = vunpack.c.h.b16 %v321
          %v335 = vunpack.c.l.b16 %v322
          %v336 = vunpack.c.h.b16 %v322
          %v337 = vpack.c.b16 %v333, %v329
          %v338 = vpack.c.b16 %v334, %v330
          %v339 = vpack.c.b16 %v335, %v331
          %v340 = vpack.c.b16 %v336, %v332
          %345 = vmatprep.subr.bf16.mxu0 %v338
          %346 = vmatpush1.bf16.xpose.msra.mxu0 %v337
          %347 = vmatprep.subr.bf16.mxu0 0
          %348 = vmatpush1.bf16.xpose.msra.mxu0 0
          %349 = vmatprep.subr.bf16.mxu0 0
          %350 = vmatpush1.bf16.xpose.msra.mxu0 0
          %351 = vmatprep.subr.bf16.mxu0 0
          %352 = vmatpush1.bf16.xpose.msra.mxu0 0
          %353 = vmatprep.subr.bf16.mxu0 0
          %354 = vmatpush1.bf16.xpose.msra.mxu0 0
          %355 = vmatprep.subr.bf16.mxu0 0
          %356 = vmatpush1.bf16.xpose.msra.mxu0 0
          %357 = vmatprep.subr.bf16.mxu0 0
          %358 = vmatpush1.bf16.xpose.msra.mxu0 0
          %359 = vmatprep.subr.bf16.mxu0 0
          %360 = vmatpush1.bf16.xpose.msra.mxu0 0
          %361 = vmatprep.subr.bf16.mxu0 0
          %362 = vmatpush1.bf16.xpose.msra.mxu0 0
          %363 = vmatprep.subr.bf16.mxu0 0
          %364 = vmatpush1.bf16.xpose.msra.mxu0 0
          %365 = vmatprep.subr.bf16.mxu0 0
          %366 = vmatpush1.bf16.xpose.msra.mxu0 0
          %367 = vmatprep.subr.bf16.mxu0 0
          %368 = vmatpush1.bf16.xpose.msra.mxu0 0
          %369 = vmatprep.subr.bf16.mxu0 0
          %370 = vmatpush1.bf16.xpose.msra.mxu0 0
          %371 = vmatprep.subr.bf16.mxu0 0
          %372 = vmatpush1.bf16.xpose.msra.mxu0 0
          %373 = vmatprep.subr.bf16.mxu0 0
          %374 = vmatpush1.bf16.xpose.msra.mxu0 0
          %375 = vmatprep.subr.bf16.mxu0 0
          %376 = vmatpush1.bf16.xpose.msra.mxu0 0
          %377 = vmatprep.mubr.bf16.mxu0 %v338
          %378 = vmatmul.mubr.bf16.gmra.mrb[0].mxu0 %v337
          %v379 = vpop.f32.mrb[0].mxu0
          %v380 = vadd.f32 0.0, %v379
          %v381 = vpop.f32.mrb[0].mxu0
          %v382 = vpop.f32.mrb[0].mxu0
          %v383 = vadd.f32 0.0, %v382
          %v384 = vpop.f32.mrb[0].mxu0
          %385 = vdwg.mxu0
          %386 = vmatprep.subr.bf16.mxu0 %v340
          %387 = vmatpush1.bf16.xpose.msra.mxu0 %v339
          %388 = vmatprep.subr.bf16.mxu0 0
          %389 = vmatpush1.bf16.xpose.msra.mxu0 0
          %390 = vmatprep.subr.bf16.mxu0 0
          %391 = vmatpush1.bf16.xpose.msra.mxu0 0
          %392 = vmatprep.subr.bf16.mxu0 0
          %393 = vmatpush1.bf16.xpose.msra.mxu0 0
          %394 = vmatprep.subr.bf16.mxu0 0
          %395 = vmatpush1.bf16.xpose.msra.mxu0 0
          %396 = vmatprep.subr.bf16.mxu0 0
          %397 = vmatpush1.bf16.xpose.msra.mxu0 0
          %398 = vmatprep.subr.bf16.mxu0 0
          %399 = vmatpush1.bf16.xpose.msra.mxu0 0
          %400 = vmatprep.subr.bf16.mxu0 0
          %401 = vmatpush1.bf16.xpose.msra.mxu0 0
          %402 = vmatprep.subr.bf16.mxu0 0
          %403 = vmatpush1.bf16.xpose.msra.mxu0 0
          %404 = vmatprep.subr.bf16.mxu0 0
          %405 = vmatpush1.bf16.xpose.msra.mxu0 0
          %406 = vmatprep.subr.bf16.mxu0 0
          %407 = vmatpush1.bf16.xpose.msra.mxu0 0
          %408 = vmatprep.subr.bf16.mxu0 0
          %409 = vmatpush1.bf16.xpose.msra.mxu0 0
          %410 = vmatprep.subr.bf16.mxu0 0
          %411 = vmatpush1.bf16.xpose.msra.mxu0 0
          %412 = vmatprep.subr.bf16.mxu0 0
          %413 = vmatpush1.bf16.xpose.msra.mxu0 0
          %414 = vmatprep.subr.bf16.mxu0 0
          %415 = vmatpush1.bf16.xpose.msra.mxu0 0
          %416 = vmatprep.subr.bf16.mxu0 0
          %417 = vmatpush1.bf16.xpose.msra.mxu0 0
          %418 = vmatprep.mubr.bf16.mxu0 %v340
          %419 = vmatmul.mubr.bf16.gmra.mrb[0].mxu0 %v339
          %v420 = vpop.f32.mrb[0].mxu0
          %v421 = vadd.f32 %v380, %v420
          %v422 = vpop.f32.mrb[0].mxu0
          %v423 = vpop.f32.mrb[0].mxu0
          %v424 = vadd.f32 %v383, %v423
          %v425 = vpop.f32.mrb[0].mxu0
          %426 = vdwg.mxu0
          %v427 = vadd.f32 %v323, %v421
          %v428 = vadd.f32 %v324, %v424
          %vm429 = vcmask 130048
          %430 = vst.msk [vmem:[#allocation2] sm:$0xff] %vm429, %v427
          %431 = vst.msk [vmem:[#allocation2 + $0x8] sm:$0xff] %vm429, %v428
        $region40: #{tpu_custom_call.1} parent=23 // pred_fallthru
          _
        // Predicated region
        $region41: #{tpu_custom_call.1} parent=23 // pred_check
          %p432 = pneg %p172
        $region42: #{tpu_custom_call.1} parent=23 // pred_check_branch
          %434 = sbr.rel (%p432) target = $region44
        $region43: #{tpu_custom_call.1} parent=23 // pred_region
          %v435 = vld [vmem:[#allocation2] sm:$0xff]
          %v436 = vld [vmem:[#allocation2 + $0x8] sm:$0xff]
          %vm437 = vcmask 130048
          %438 = vst.msk [vmem:[%s162] sm:$0xff] %vm437, %v435
          %439 = vst.msk [vmem:[%s162 + $0x8] sm:$0xff] %vm437, %v436
        $region44: #{tpu_custom_call.1} parent=23 // pred_fallthru
          _
        %s440 = sand.u32 %s70, 1
        %s441 = scalar_lea.sflag [#allocation5], %s440
        %s442 = sand.u32 %s70, 1
        %s443 = smul.addr %s442, 16
        %s444 = scalar_lea.vmem [#allocation6], %s443
        // Predicated region
        $region45: #{tpu_custom_call.1} parent=23 // pred_check
          %p445 = pneg %p80
        $region46: #{tpu_custom_call.1} parent=23 // pred_check_branch
          %447 = sbr.rel (%p445) target = $region48
        $region47: #{tpu_custom_call.1} parent=23 // pred_region
          %s449 = ssub.s32 256, 256
          %450 = vsyncadd %s441, %s449
          %s451 = smul.addr %s22, 2
          %s452 = smul.addr %s451, 128
          %s453 = scalar_lea.hbm %s1, %s452
          %s454 = sshll.u32 %s444, 4
          %s455 = int_to_ptr.vmem [resolvable:$true] %s454
          %460 = dma.vmem_to_hbm [thread:$0]  %s455, 256, %s453, %s441, 128, 128, 8
        $region48: #{tpu_custom_call.1} parent=23 // pred_fallthru
          _
      $region24: #{tpu_custom_call.1} parent=5 // pred_fallthru
        _
      %p461 = scmp.le.s32.totalorder 2, %s13
      // Predicated region
      $region49: #{tpu_custom_call.1} parent=5 // pred_check
        %p462 = pneg %p461
      $region50: #{tpu_custom_call.1} parent=5 // pred_check_branch
        %464 = sbr.rel (%p462) target = $region52
      $region51: #{tpu_custom_call.1} parent=5 // pred_region
        %s465 = ssub.s32 %s13, 2
        // Predicated region
        $region53: #{tpu_custom_call.1} parent=51 // pred_check
          %p466 = pneg %p86
        $region54: #{tpu_custom_call.1} parent=51 // pred_check_branch
          %468 = sbr.rel (%p466) target = $region56
        $region55: #{tpu_custom_call.1} parent=51 // pred_region
          %s469 = sand.u32 %s71, 1
          %s470 = scalar_lea.sflag [#allocation5], %s469
          %s471 = sand.u32 %s71, 1
          %s472 = smul.addr %s471, 16
          %s473 = scalar_lea.vmem [#allocation6], %s472
          %474 = dma.done %s470, 256
        $region56: #{tpu_custom_call.1} parent=51 // pred_fallthru
          _
      $region52: #{tpu_custom_call.1} parent=5 // pred_fallthru
        _
    $region6: #{tpu_custom_call.1} parent=1 // loop_footer
      %s17 = sadd.s32 1, %s13
    $region7: #{tpu_custom_call.1} parent=1 // loop_footer_branch
      %12 = sbr.rel target = $region3
    $region8: #{tpu_custom_call.1} parent=1 // loop_exit
      _
    %475 = vsyncpa [#allocation4], 1
    %s476 = scalar_lea.sflag [#allocation4], 1
    %477 = vsyncpa %s476, 1
    %478 = vsyncpa [#allocation5], 1
    %s479 = scalar_lea.sflag [#allocation5], 1
    %480 = vsyncpa %s479, 1

</llo_original>
